<compile_context>
chip_gen: v5e
topology: v5e:2x2
jax: 0.10.0
libtpu: 0.0.40
codegen_flags: <defaults>
</compile_context>

<pallas_src>
import functools

import jax
import jax.numpy as jnp
from jax.experimental import pallas as pl
from jax.experimental.pallas import tpu as pltpu


LANE = 128  # TPU lane width; output feature dim is padded to a multiple of this.


def _fe_kernel(x_ref, w_ref, b_ref, o_ref):
    """relu(x @ w + b): f32 activations cast to bf16 in-kernel, bf16 MXU
    inputs, f32 accumulate, f32 bias+ReLU epilogue."""
    x = x_ref[...].astype(jnp.bfloat16)
    acc = jnp.dot(x, w_ref[...], preferred_element_type=jnp.float32)
    o_ref[...] = jnp.maximum(acc + b_ref[...], 0.0).astype(o_ref.dtype)


def prepare_fe_params(fe_w, fe_b):
    """One-time parameter setup: pad the feature dim to a lane-dense multiple
    of 128 and cast the weight to bf16. Runs once, outside the hot path."""
    K, D = fe_w.shape
    Dp = ((D + LANE - 1) // LANE) * LANE
    w_p = jnp.pad(fe_w, ((0, 0), (0, Dp - D))).astype(jnp.bfloat16)   # (K, Dp)
    b_p = jnp.pad(fe_b, (0, Dp - D)).reshape(1, Dp).astype(jnp.float32)  # (1, Dp)
    return jax.device_put(w_p), jax.device_put(b_p), D


def feature_extract(x, w_p, b_p, *, tile_m=256):
    """x: (N, K) f32, w_p: (K, Dp) bf16, b_p: (1, Dp) f32 -> (N, Dp) f32.
    Padded output columns are exactly zero (zero weight cols + zero bias)."""
    N, K = x.shape
    Kw, Dp = w_p.shape
    assert K == Kw, (K, Kw)

    if N >= 2 * tile_m and N % tile_m == 0:
        # Large-N path: parallel M grid so megacore (v7x: 2 TCs) shards rows;
        # bounded TILE_M keeps double-buffered blocks inside v7x VMEM.
        return pl.pallas_call(
            _fe_kernel,
            out_shape=jax.ShapeDtypeStruct((N, Dp), jnp.float32),
            grid=(N // tile_m,),
            in_specs=[
                pl.BlockSpec((tile_m, K), lambda i: (i, 0)),
                pl.BlockSpec((K, Dp), lambda i: (0, 0)),
                pl.BlockSpec((1, Dp), lambda i: (0, 0)),
            ],
            out_specs=pl.BlockSpec((tile_m, Dp), lambda i: (i, 0)),
            compiler_params=pltpu.CompilerParams(
                dimension_semantics=("parallel",),
            ),
        )(x, w_p, b_p)

    # Small-N path: no grid, whole-array VMEM blocks — no 1-step pipeline
    # machinery, no double-buffering. Whole problem is a few hundred KB.
    return pl.pallas_call(
        _fe_kernel,
        out_shape=jax.ShapeDtypeStruct((N, Dp), jnp.float32),
        in_specs=[
            pl.BlockSpec(memory_space=pltpu.MemorySpace.VMEM),
            pl.BlockSpec(memory_space=pltpu.MemorySpace.VMEM),
            pl.BlockSpec(memory_space=pltpu.MemorySpace.VMEM),
        ],
        out_specs=pl.BlockSpec(memory_space=pltpu.MemorySpace.VMEM),
    )(x, w_p, b_p)


@functools.partial(jax.jit, static_argnames=("seq_len",))
def template_forward(responses_t, data_t, teaching_signal_t, w_p, b_p, *, seq_len):
    """Mirrors Template.forward."""
    orig_shape = data_t.shape                      # (B, T, C, H, W)
    B, T = orig_shape[0], orig_shape[1]
    # data_t.flatten(0, -4) -> (B*T, C, H, W); the extractor flattens C,H,W.
    x = data_t.reshape(B * T, -1)
    # Lane-dense padded features; sliced to D only by the final consumer.
    feats_padded = feature_extract(x, w_p, b_p).reshape(B, T, 1, -1)
    # for t in range(seq_len): break   -> loop body never executes
    responses = None
    # PyTorch forward returns only dict(responses=None); feats_padded is
    # included so the kernel output can be materialized / checked.
    return dict(responses=responses, feats_padded=feats_padded)


if __name__ == "__main__":
    # Module hyperparameters (small, consistent with the forward pass).
    response_dimension = (8, 4)     # (..., num_classes)
    input_dimension = (4, 32)       # (channels, feature_dim); extractor dim = 32
    out_dimension = (4, 32)
    seq_len = 8

    B, T = 2, seq_len
    C, H, W = input_dimension[0], 16, 16
    D = input_dimension[1]
    K = C * H * W                   # 1024

    key = jax.random.PRNGKey(0)
    k_data, k_resp, k_teach, k_w, k_b = jax.random.split(key, 5)

    data_t = jax.random.normal(k_data, (B, T, C, H, W), dtype=jnp.float32)
    responses_t = jax.random.normal(k_resp, (B, seq_len, response_dimension[-1]),
                                    dtype=jnp.float32)
    teaching_signal_t = jax.random.normal(k_teach, (B, response_dimension[-1]),
                                          dtype=jnp.float32)

    # Deterministic synthetic feature-extractor parameters.
    fe_w = jax.random.normal(k_w, (K, D), dtype=jnp.float32) * (1.0 / jnp.sqrt(K))
    fe_b = jax.random.normal(k_b, (D,), dtype=jnp.float32) * 0.01

    # TODO(synk): the real feature extractor comes from an external fe_builder;
    # a Linear+ReLU stand-in with matching output dimension is used here.

    # One-time parameter setup (pad + bf16 cast hoisted out of the hot path).
    w_p, b_p, D_out = prepare_fe_params(fe_w, fe_b)

    out = template_forward(responses_t, data_t, teaching_signal_t, w_p, b_p,
                           seq_len=seq_len)
    feats_padded = jax.block_until_ready(out["feats_padded"])

    assert out["responses"] is None
    assert feats_padded.shape == (B, T, 1, LANE), feats_padded.shape

    # Final consumer slices the padded layout back to D.
    feats = feats_padded[..., :D_out]
    assert feats.shape == (B, T, 1, D), feats.shape

    # Cross-check the Pallas kernel against plain JAX using the same bf16-cast
    # inputs (products are exact in f32; only accumulation order differs).
    xb = data_t.reshape(B * T, -1).astype(jnp.bfloat16).astype(jnp.float32)
    wb = fe_w.astype(jnp.bfloat16).astype(jnp.float32)
    ref = jnp.maximum(xb @ wb + fe_b, 0.0).reshape(B, T, 1, D)
    assert jnp.allclose(feats, ref, atol=1e-2, rtol=1e-2)
    # Padded columns must be exactly zero.
    assert jnp.all(feats_padded[..., D_out:] == 0.0)

    print("KERNEL_OK")
</pallas_src>

<mosaic_0001>
module attributes {stable_mosaic.version = 11 : i64} {
  func.func @_fe_kernel(%arg0: memref<16x1024xf32, #tpu.memory_space<vmem>>, %arg1: memref<1024x128xbf16, #tpu.memory_space<vmem>>, %arg2: memref<1x128xf32, #tpu.memory_space<vmem>>, %arg3: memref<16x128xf32, #tpu.memory_space<vmem>>) attributes {dimension_semantics = [], scalar_prefetch = 0 : i64, scratch_operands = 0 : i64, tpu.core_type = #tpu.core_type<tc>} {
    %c0 = arith.constant 0 : index
    %c0_0 = arith.constant 0 : index
    %0 = vector.load %arg0[%c0, %c0_0] : memref<16x1024xf32, #tpu.memory_space<vmem>>, vector<16x1024xf32>
    %1 = arith.truncf %0 : vector<16x1024xf32> to vector<16x1024xbf16>
    %c0_1 = arith.constant 0 : index
    %c0_2 = arith.constant 0 : index
    %2 = vector.load %arg1[%c0_1, %c0_2] : memref<1024x128xbf16, #tpu.memory_space<vmem>>, vector<1024x128xbf16>
    %cst = arith.constant dense<0.000000e+00> : vector<16x128xf32>
    %3 = tpu.matmul %1, %2, %cst {dimension_numbers = #tpu.dot_dimension_numbers<[1], [0], [0], [1], [0, 0, 1, 1], [], []>} : vector<16x1024xbf16>, vector<1024x128xbf16>, vector<16x128xf32> -> vector<16x128xf32>
    %c0_3 = arith.constant 0 : index
    %c0_4 = arith.constant 0 : index
    %4 = vector.load %arg2[%c0_3, %c0_4] : memref<1x128xf32, #tpu.memory_space<vmem>>, vector<1x128xf32>
    %5 = vector.broadcast %4 : vector<1x128xf32> to vector<16x128xf32>
    %6 = arith.addf %3, %5 : vector<16x128xf32>
    %cst_5 = arith.constant 0.000000e+00 : f32
    %7 = vector.broadcast %cst_5 : f32 to vector<16x128xf32>
    %8 = arith.maximumf %6, %7 : vector<16x128xf32>
    %c0_6 = arith.constant 0 : index
    %c0_7 = arith.constant 0 : index
    %9 = vector.load %arg3[%c0_6, %c0_7] : memref<16x128xf32, #tpu.memory_space<vmem>>, vector<16x128xf32>
    tpu.vector_store %arg3[%c0_6, %c0_7], %8 {strides = array<i32>} : memref<16x128xf32, #tpu.memory_space<vmem>>, vector<16x128xf32>,
    return
  }
}

</mosaic_0001>

<llo_original>
// kernel: template_forward.1
$region0: #{template_forward.1}
  #allocation0 [shape = 'u32[]', space=smem, size = 0x4, offset = 0x4, fixed_abs, tag = 'smem constant byte address 0x4 - core index']
  #allocation1 [shape = 'u32[72,128]{1,0:T(1,128)}', space=vmem, size = 0x9000, scoped, tag = 'internal scratch']
  %s0 = inlined_call_operand.vmem [shape: f32[16,1024], index: 0, kind: input, shape index: {}]
  %s1 = inlined_call_operand.vmem [shape: bf16[1024,128], index: 1, kind: input, shape index: {}]
  %s2 = inlined_call_operand.vmem [shape: f32[1,128], index: 2, kind: input, shape index: {}]
  %s3 = inlined_call_operand.hbm [shape: f32[16,128], index: 3, kind: output, shape index: {}]
  %s4 = sld [smem:[#allocation0]]
  $region22: #{template_forward.1} parent=0
    _
  %s6 = ssub.s32 1, %s4
  %s7 = scalar_select 0, %s6, %s4
  $region1: #{template_forward.1} parent=0
    #allocation2 [shape = 'u8[8192]{0}', space=vmem, size = 0x2000, scoped, tag = 'output window, operand 0, single buffered']
    #allocation3 [shape = 's32[1]{0}', space=sflag, size = 0x4, scoped, tag = 'scoped memory for template_forward.1']
    %8 = vsyncpa [#allocation3], 0
    // Predicated region
    $region2: #{template_forward.1} parent=1 // pred_check
      _
    $region3: #{template_forward.1} parent=1 // pred_check_branch
      %10 = sbr.rel (0) target = $region5
    $region4: #{template_forward.1} parent=1 // pred_region
      _
    $region5: #{template_forward.1} parent=1 // pred_fallthru
      _
    // Predicated region
    $region6: #{template_forward.1} parent=1 // pred_check
      _
    $region7: #{template_forward.1} parent=1 // pred_check_branch
      %12 = sbr.rel (0) target = $region9
    $region8: #{template_forward.1} parent=1 // pred_region
      _
    $region9: #{template_forward.1} parent=1 // pred_fallthru
      _
    // Predicated region
    $region10: #{template_forward.1} parent=1 // pred_check
      _
    $region11: #{template_forward.1} parent=1 // pred_check_branch
      %14 = sbr.rel (0) target = $region13
    $region12: #{template_forward.1} parent=1 // pred_region
      _
    $region13: #{template_forward.1} parent=1 // pred_fallthru
      _
    %v15 = vld [vmem:[%s0] sm:$0xff]
    %v16 = vld [vmem:[%s0 + $0x8] sm:$0xff]
    %v17 = vld [vmem:[%s0 + $0x10] sm:$0xff]
    %v18 = vld [vmem:[%s0 + $0x18] sm:$0xff]
    %v19 = vld [vmem:[%s0 + $0x20] sm:$0xff]
    %v20 = vld [vmem:[%s0 + $0x28] sm:$0xff]
    %v21 = vld [vmem:[%s0 + $0x30] sm:$0xff]
    %v22 = vld [vmem:[%s0 + $0x38] sm:$0xff]
    %v23 = vld [vmem:[%s0 + $0x40] sm:$0xff]
    %v24 = vld [vmem:[%s0 + $0x48] sm:$0xff]
    %v25 = vld [vmem:[%s0 + $0x50] sm:$0xff]
    %v26 = vld [vmem:[%s0 + $0x58] sm:$0xff]
    %v27 = vld [vmem:[%s0 + $0x60] sm:$0xff]
    %v28 = vld [vmem:[%s0 + $0x68] sm:$0xff]
    %v29 = vld [vmem:[%s0 + $0x70] sm:$0xff]
    %v30 = vld [vmem:[%s0 + $0x78] sm:$0xff]
    %v31 = vpack.c.bf16 %v23, %v15
    %v32 = vpack.c.bf16 %v24, %v16
    %v33 = vpack.c.bf16 %v25, %v17
    %v34 = vpack.c.bf16 %v26, %v18
    %v35 = vpack.c.bf16 %v27, %v19
    %v36 = vpack.c.bf16 %v28, %v20
    %v37 = vpack.c.bf16 %v29, %v21
    %v38 = vpack.c.bf16 %v30, %v22
    %v39 = vld [vmem:[%s1] sm:$0xf]
    %v40 = vld [vmem:[%s1 + $0x4] sm:$0xf]
    %v41 = vld [vmem:[%s1 + $0x8] sm:$0xf]
    %v42 = vld [vmem:[%s1 + $0xc] sm:$0xf]
    %v43 = vld [vmem:[%s1 + $0x10] sm:$0xf]
    %v44 = vld [vmem:[%s1 + $0x14] sm:$0xf]
    %v45 = vld [vmem:[%s1 + $0x18] sm:$0xf]
    %v46 = vld [vmem:[%s1 + $0x1c] sm:$0xf]
    %v47 = vld [vmem:[%s1 + $0x20] sm:$0xf]
    %v48 = vld [vmem:[%s1 + $0x24] sm:$0xf]
    %v49 = vld [vmem:[%s1 + $0x28] sm:$0xf]
    %v50 = vld [vmem:[%s1 + $0x2c] sm:$0xf]
    %v51 = vld [vmem:[%s1 + $0x30] sm:$0xf]
    %v52 = vld [vmem:[%s1 + $0x34] sm:$0xf]
    %v53 = vld [vmem:[%s1 + $0x38] sm:$0xf]
    %v54 = vld [vmem:[%s1 + $0x3c] sm:$0xf]
    %v55 = vld [vmem:[%s1 + $0x40] sm:$0xf]
    %v56 = vld [vmem:[%s1 + $0x44] sm:$0xf]
    %v57 = vld [vmem:[%s1 + $0x48] sm:$0xf]
    %v58 = vld [vmem:[%s1 + $0x4c] sm:$0xf]
    %v59 = vld [vmem:[%s1 + $0x50] sm:$0xf]
    %v60 = vld [vmem:[%s1 + $0x54] sm:$0xf]
    %v61 = vld [vmem:[%s1 + $0x58] sm:$0xf]
    %v62 = vld [vmem:[%s1 + $0x5c] sm:$0xf]
    %v63 = vld [vmem:[%s1 + $0x60] sm:$0xf]
    %v64 = vld [vmem:[%s1 + $0x64] sm:$0xf]
    %v65 = vld [vmem:[%s1 + $0x68] sm:$0xf]
    %v66 = vld [vmem:[%s1 + $0x6c] sm:$0xf]
    %v67 = vld [vmem:[%s1 + $0x70] sm:$0xf]
    %v68 = vld [vmem:[%s1 + $0x74] sm:$0xf]
    %v69 = vld [vmem:[%s1 + $0x78] sm:$0xf]
    %v70 = vld [vmem:[%s1 + $0x7c] sm:$0xf]
    %v71 = vld [vmem:[%s1 + $0x80] sm:$0xf]
    %v72 = vld [vmem:[%s1 + $0x84] sm:$0xf]
    %v73 = vld [vmem:[%s1 + $0x88] sm:$0xf]
    %v74 = vld [vmem:[%s1 + $0x8c] sm:$0xf]
    %v75 = vld [vmem:[%s1 + $0x90] sm:$0xf]
    %v76 = vld [vmem:[%s1 + $0x94] sm:$0xf]
    %v77 = vld [vmem:[%s1 + $0x98] sm:$0xf]
    %v78 = vld [vmem:[%s1 + $0x9c] sm:$0xf]
    %v79 = vld [vmem:[%s1 + $0xa0] sm:$0xf]
    %v80 = vld [vmem:[%s1 + $0xa4] sm:$0xf]
    %v81 = vld [vmem:[%s1 + $0xa8] sm:$0xf]
    %v82 = vld [vmem:[%s1 + $0xac] sm:$0xf]
    %v83 = vld [vmem:[%s1 + $0xb0] sm:$0xf]
    %v84 = vld [vmem:[%s1 + $0xb4] sm:$0xf]
    %v85 = vld [vmem:[%s1 + $0xb8] sm:$0xf]
    %v86 = vld [vmem:[%s1 + $0xbc] sm:$0xf]
    %v87 = vld [vmem:[%s1 + $0xc0] sm:$0xf]
    %v88 = vld [vmem:[%s1 + $0xc4] sm:$0xf]
    %v89 = vld [vmem:[%s1 + $0xc8] sm:$0xf]
    %v90 = vld [vmem:[%s1 + $0xcc] sm:$0xf]
    %v91 = vld [vmem:[%s1 + $0xd0] sm:$0xf]
    %v92 = vld [vmem:[%s1 + $0xd4] sm:$0xf]
    %v93 = vld [vmem:[%s1 + $0xd8] sm:$0xf]
    %v94 = vld [vmem:[%s1 + $0xdc] sm:$0xf]
    %v95 = vld [vmem:[%s1 + $0xe0] sm:$0xf]
    %v96 = vld [vmem:[%s1 + $0xe4] sm:$0xf]
    %v97 = vld [vmem:[%s1 + $0xe8] sm:$0xf]
    %v98 = vld [vmem:[%s1 + $0xec] sm:$0xf]
    %v99 = vld [vmem:[%s1 + $0xf0] sm:$0xf]
    %v100 = vld [vmem:[%s1 + $0xf4] sm:$0xf]
    %v101 = vld [vmem:[%s1 + $0xf8] sm:$0xf]
    %v102 = vld [vmem:[%s1 + $0xfc] sm:$0xf]
    %v103 = vld [vmem:[%s1 + $0x100] sm:$0xf]
    %v104 = vld [vmem:[%s1 + $0x104] sm:$0xf]
    %v105 = vld [vmem:[%s1 + $0x108] sm:$0xf]
    %v106 = vld [vmem:[%s1 + $0x10c] sm:$0xf]
    %v107 = vld [vmem:[%s1 + $0x110] sm:$0xf]
    %v108 = vld [vmem:[%s1 + $0x114] sm:$0xf]
    %v109 = vld [vmem:[%s1 + $0x118] sm:$0xf]
    %v110 = vld [vmem:[%s1 + $0x11c] sm:$0xf]
    %v111 = vld [vmem:[%s1 + $0x120] sm:$0xf]
    %v112 = vld [vmem:[%s1 + $0x124] sm:$0xf]
    %v113 = vld [vmem:[%s1 + $0x128] sm:$0xf]
    %v114 = vld [vmem:[%s1 + $0x12c] sm:$0xf]
    %v115 = vld [vmem:[%s1 + $0x130] sm:$0xf]
    %v116 = vld [vmem:[%s1 + $0x134] sm:$0xf]
    %v117 = vld [vmem:[%s1 + $0x138] sm:$0xf]
    %v118 = vld [vmem:[%s1 + $0x13c] sm:$0xf]
    %v119 = vld [vmem:[%s1 + $0x140] sm:$0xf]
    %v120 = vld [vmem:[%s1 + $0x144] sm:$0xf]
    %v121 = vld [vmem:[%s1 + $0x148] sm:$0xf]
    %v122 = vld [vmem:[%s1 + $0x14c] sm:$0xf]
    %v123 = vld [vmem:[%s1 + $0x150] sm:$0xf]
    %v124 = vld [vmem:[%s1 + $0x154] sm:$0xf]
    %v125 = vld [vmem:[%s1 + $0x158] sm:$0xf]
    %v126 = vld [vmem:[%s1 + $0x15c] sm:$0xf]
    %v127 = vld [vmem:[%s1 + $0x160] sm:$0xf]
    %v128 = vld [vmem:[%s1 + $0x164] sm:$0xf]
    %v129 = vld [vmem:[%s1 + $0x168] sm:$0xf]
    %v130 = vld [vmem:[%s1 + $0x16c] sm:$0xf]
    %v131 = vld [vmem:[%s1 + $0x170] sm:$0xf]
    %v132 = vld [vmem:[%s1 + $0x174] sm:$0xf]
    %v133 = vld [vmem:[%s1 + $0x178] sm:$0xf]
    %v134 = vld [vmem:[%s1 + $0x17c] sm:$0xf]
    %v135 = vld [vmem:[%s1 + $0x180] sm:$0xf]
    %v136 = vld [vmem:[%s1 + $0x184] sm:$0xf]
    %v137 = vld [vmem:[%s1 + $0x188] sm:$0xf]
    %v138 = vld [vmem:[%s1 + $0x18c] sm:$0xf]
    %v139 = vld [vmem:[%s1 + $0x190] sm:$0xf]
    %v140 = vld [vmem:[%s1 + $0x194] sm:$0xf]
    %v141 = vld [vmem:[%s1 + $0x198] sm:$0xf]
    %v142 = vld [vmem:[%s1 + $0x19c] sm:$0xf]
    %v143 = vld [vmem:[%s1 + $0x1a0] sm:$0xf]
    %v144 = vld [vmem:[%s1 + $0x1a4] sm:$0xf]
    %v145 = vld [vmem:[%s1 + $0x1a8] sm:$0xf]
    %v146 = vld [vmem:[%s1 + $0x1ac] sm:$0xf]
    %v147 = vld [vmem:[%s1 + $0x1b0] sm:$0xf]
    %v148 = vld [vmem:[%s1 + $0x1b4] sm:$0xf]
    %v149 = vld [vmem:[%s1 + $0x1b8] sm:$0xf]
    %v150 = vld [vmem:[%s1 + $0x1bc] sm:$0xf]
    %v151 = vld [vmem:[%s1 + $0x1c0] sm:$0xf]
    %v152 = vld [vmem:[%s1 + $0x1c4] sm:$0xf]
    %v153 = vld [vmem:[%s1 + $0x1c8] sm:$0xf]
    %v154 = vld [vmem:[%s1 + $0x1cc] sm:$0xf]
    %v155 = vld [vmem:[%s1 + $0x1d0] sm:$0xf]
    %v156 = vld [vmem:[%s1 + $0x1d4] sm:$0xf]
    %v157 = vld [vmem:[%s1 + $0x1d8] sm:$0xf]
    %v158 = vld [vmem:[%s1 + $0x1dc] sm:$0xf]
    %v159 = vld [vmem:[%s1 + $0x1e0] sm:$0xf]
    %v160 = vld [vmem:[%s1 + $0x1e4] sm:$0xf]
    %v161 = vld [vmem:[%s1 + $0x1e8] sm:$0xf]
    %v162 = vld [vmem:[%s1 + $0x1ec] sm:$0xf]
    %v163 = vld [vmem:[%s1 + $0x1f0] sm:$0xf]
    %v164 = vld [vmem:[%s1 + $0x1f4] sm:$0xf]
    %v165 = vld [vmem:[%s1 + $0x1f8] sm:$0xf]
    %v166 = vld [vmem:[%s1 + $0x1fc] sm:$0xf]
    %v167 = vld [vmem:[%s2] sm:$0x1]
    %v169 = vperm.slane %v167, 0
    %v299 = vunpack.c.l.b16 %v39
    %v300 = vunpack.c.l.b16 %v40
    %v301 = vunpack.c.l.b16 %v41
    %v302 = vunpack.c.l.b16 %v42
    %v303 = vunpack.c.l.b16 %v43
    %v304 = vunpack.c.l.b16 %v44
    %v305 = vunpack.c.l.b16 %v45
    %v306 = vunpack.c.l.b16 %v46
    %v307 = vunpack.c.l.b16 %v47
    %v308 = vunpack.c.l.b16 %v48
    %v309 = vunpack.c.l.b16 %v49
    %v310 = vunpack.c.l.b16 %v50
    %v311 = vunpack.c.l.b16 %v51
    %v312 = vunpack.c.l.b16 %v52
    %v313 = vunpack.c.l.b16 %v53
    %v314 = vunpack.c.l.b16 %v54
    %v315 = vunpack.c.l.b16 %v55
    %v316 = vunpack.c.l.b16 %v56
    %v317 = vunpack.c.l.b16 %v57
    %v318 = vunpack.c.l.b16 %v58
    %v319 = vunpack.c.l.b16 %v59
    %v320 = vunpack.c.l.b16 %v60
    %v321 = vunpack.c.l.b16 %v61
    %v322 = vunpack.c.l.b16 %v62
    %v323 = vunpack.c.l.b16 %v63
    %v324 = vunpack.c.l.b16 %v64
    %v325 = vunpack.c.l.b16 %v65
    %v326 = vunpack.c.l.b16 %v66
    %v327 = vunpack.c.l.b16 %v67
    %v328 = vunpack.c.l.b16 %v68
    %v329 = vunpack.c.l.b16 %v69
    %v330 = vunpack.c.l.b16 %v70
    %v331 = vunpack.c.l.b16 %v71
    %v332 = vunpack.c.l.b16 %v72
    %v333 = vunpack.c.l.b16 %v73
    %v334 = vunpack.c.l.b16 %v74
    %v335 = vunpack.c.l.b16 %v75
    %v336 = vunpack.c.l.b16 %v76
    %v337 = vunpack.c.l.b16 %v77
    %v338 = vunpack.c.l.b16 %v78
    %v339 = vunpack.c.l.b16 %v79
    %v340 = vunpack.c.l.b16 %v80
    %v341 = vunpack.c.l.b16 %v81
    %v342 = vunpack.c.l.b16 %v82
    %v343 = vunpack.c.l.b16 %v83
    %v344 = vunpack.c.l.b16 %v84
    %v345 = vunpack.c.l.b16 %v85
    %v346 = vunpack.c.l.b16 %v86
    %v347 = vunpack.c.l.b16 %v87
    %v348 = vunpack.c.l.b16 %v88
    %v349 = vunpack.c.l.b16 %v89
    %v350 = vunpack.c.l.b16 %v90
    %v351 = vunpack.c.l.b16 %v91
    %v352 = vunpack.c.l.b16 %v92
    %v353 = vunpack.c.l.b16 %v93
    %v354 = vunpack.c.l.b16 %v94
    %v355 = vunpack.c.l.b16 %v95
    %v356 = vunpack.c.l.b16 %v96
    %v357 = vunpack.c.l.b16 %v97
    %v358 = vunpack.c.l.b16 %v98
    %v359 = vunpack.c.l.b16 %v99
    %v360 = vunpack.c.l.b16 %v100
    %v361 = vunpack.c.l.b16 %v101
    %v362 = vunpack.c.l.b16 %v102
    %v363 = vunpack.c.l.b16 %v103
    %v364 = vunpack.c.l.b16 %v104
    %v365 = vunpack.c.l.b16 %v105
    %v366 = vunpack.c.l.b16 %v106
    %v367 = vunpack.c.l.b16 %v107
    %v368 = vunpack.c.l.b16 %v108
    %v369 = vunpack.c.l.b16 %v109
    %v370 = vunpack.c.l.b16 %v110
    %v371 = vunpack.c.l.b16 %v111
    %v372 = vunpack.c.l.b16 %v112
    %v373 = vunpack.c.l.b16 %v113
    %v374 = vunpack.c.l.b16 %v114
    %v375 = vunpack.c.l.b16 %v115
    %v376 = vunpack.c.l.b16 %v116
    %v377 = vunpack.c.l.b16 %v117
    %v378 = vunpack.c.l.b16 %v118
    %v379 = vunpack.c.l.b16 %v119
    %v380 = vunpack.c.l.b16 %v120
    %v381 = vunpack.c.l.b16 %v121
    %v382 = vunpack.c.l.b16 %v122
    %v383 = vunpack.c.l.b16 %v123
    %v384 = vunpack.c.l.b16 %v124
    %v385 = vunpack.c.l.b16 %v125
    %v386 = vunpack.c.l.b16 %v126
    %v387 = vunpack.c.l.b16 %v127
    %v388 = vunpack.c.l.b16 %v128
    %v389 = vunpack.c.l.b16 %v129
    %v390 = vunpack.c.l.b16 %v130
    %v391 = vunpack.c.l.b16 %v131
    %v392 = vunpack.c.l.b16 %v132
    %v393 = vunpack.c.l.b16 %v133
    %v394 = vunpack.c.l.b16 %v134
    %v395 = vunpack.c.l.b16 %v135
    %v396 = vunpack.c.l.b16 %v136
    %v397 = vunpack.c.l.b16 %v137
    %v398 = vunpack.c.l.b16 %v138
    %v399 = vunpack.c.l.b16 %v139
    %v400 = vunpack.c.l.b16 %v140
    %v401 = vunpack.c.l.b16 %v141
    %v402 = vunpack.c.l.b16 %v142
    %v403 = vunpack.c.l.b16 %v143
    %v404 = vunpack.c.l.b16 %v144
    %v405 = vunpack.c.l.b16 %v145
    %v406 = vunpack.c.l.b16 %v146
    %v407 = vunpack.c.l.b16 %v147
    %v408 = vunpack.c.l.b16 %v148
    %v409 = vunpack.c.l.b16 %v149
    %v410 = vunpack.c.l.b16 %v150
    %v411 = vunpack.c.l.b16 %v151
    %v412 = vunpack.c.l.b16 %v152
    %v413 = vunpack.c.l.b16 %v153
    %v414 = vunpack.c.l.b16 %v154
    %v415 = vunpack.c.l.b16 %v155
    %v416 = vunpack.c.l.b16 %v156
    %v417 = vunpack.c.l.b16 %v157
    %v418 = vunpack.c.l.b16 %v158
    %v419 = vunpack.c.l.b16 %v159
    %v420 = vunpack.c.l.b16 %v160
    %v421 = vunpack.c.l.b16 %v161
    %v422 = vunpack.c.l.b16 %v162
    %v423 = vunpack.c.l.b16 %v163
    %v424 = vunpack.c.l.b16 %v164
    %v425 = vunpack.c.l.b16 %v165
    %v426 = vunpack.c.l.b16 %v166
    %v427 = vpack.c.b16 %v300, %v299
    %v428 = vpack.c.b16 %v302, %v301
    %v429 = vpack.c.b16 %v304, %v303
    %v430 = vpack.c.b16 %v306, %v305
    %v431 = vpack.c.b16 %v308, %v307
    %v432 = vpack.c.b16 %v310, %v309
    %v433 = vpack.c.b16 %v312, %v311
    %v434 = vpack.c.b16 %v314, %v313
    %v435 = vpack.c.b16 %v316, %v315
    %v436 = vpack.c.b16 %v318, %v317
    %v437 = vpack.c.b16 %v320, %v319
    %v438 = vpack.c.b16 %v322, %v321
    %v439 = vpack.c.b16 %v324, %v323
    %v440 = vpack.c.b16 %v326, %v325
    %v441 = vpack.c.b16 %v328, %v327
    %v442 = vpack.c.b16 %v330, %v329
    %v443 = vpack.c.b16 %v332, %v331
    %v444 = vpack.c.b16 %v334, %v333
    %v445 = vpack.c.b16 %v336, %v335
    %v446 = vpack.c.b16 %v338, %v337
    %v447 = vpack.c.b16 %v340, %v339
    %v448 = vpack.c.b16 %v342, %v341
    %v449 = vpack.c.b16 %v344, %v343
    %v450 = vpack.c.b16 %v346, %v345
    %v451 = vpack.c.b16 %v348, %v347
    %v452 = vpack.c.b16 %v350, %v349
    %v453 = vpack.c.b16 %v352, %v351
    %v454 = vpack.c.b16 %v354, %v353
    %v455 = vpack.c.b16 %v356, %v355
    %v456 = vpack.c.b16 %v358, %v357
    %v457 = vpack.c.b16 %v360, %v359
    %v458 = vpack.c.b16 %v362, %v361
    %v459 = vpack.c.b16 %v364, %v363
    %v460 = vpack.c.b16 %v366, %v365
    %v461 = vpack.c.b16 %v368, %v367
    %v462 = vpack.c.b16 %v370, %v369
    %v463 = vpack.c.b16 %v372, %v371
    %v464 = vpack.c.b16 %v374, %v373
    %v465 = vpack.c.b16 %v376, %v375
    %v466 = vpack.c.b16 %v378, %v377
    %v467 = vpack.c.b16 %v380, %v379
    %v468 = vpack.c.b16 %v382, %v381
    %v469 = vpack.c.b16 %v384, %v383
    %v470 = vpack.c.b16 %v386, %v385
    %v471 = vpack.c.b16 %v388, %v387
    %v472 = vpack.c.b16 %v390, %v389
    %v473 = vpack.c.b16 %v392, %v391
    %v474 = vpack.c.b16 %v394, %v393
    %v475 = vpack.c.b16 %v396, %v395
    %v476 = vpack.c.b16 %v398, %v397
    %v477 = vpack.c.b16 %v400, %v399
    %v478 = vpack.c.b16 %v402, %v401
    %v479 = vpack.c.b16 %v404, %v403
    %v480 = vpack.c.b16 %v406, %v405
    %v481 = vpack.c.b16 %v408, %v407
    %v482 = vpack.c.b16 %v410, %v409
    %v483 = vpack.c.b16 %v412, %v411
    %v484 = vpack.c.b16 %v414, %v413
    %v485 = vpack.c.b16 %v416, %v415
    %v486 = vpack.c.b16 %v418, %v417
    %v487 = vpack.c.b16 %v420, %v419
    %v488 = vpack.c.b16 %v422, %v421
    %v489 = vpack.c.b16 %v424, %v423
    %v490 = vpack.c.b16 %v426, %v425
    %555 = vmatpush.bf16.msra.mxu0 %v434
    %556 = vmatpush.bf16.msra.mxu0 %v433
    %557 = vmatpush.bf16.msra.mxu0 %v432
    %558 = vmatpush.bf16.msra.mxu0 %v431
    %559 = vmatpush.bf16.msra.mxu0 %v430
    %560 = vmatpush.bf16.msra.mxu0 %v429
    %561 = vmatpush.bf16.msra.mxu0 %v428
    %562 = vmatpush.bf16.msra.mxu0 %v427
    %563 = vmatmul.bf16.gmra.mxu0 %v31
    %v564 = vpop.f32.mrf.mxu0
    %v565 = vadd.f32 %v169, %v564
    %v566 = vpop.f32.mrf.mxu0
    %v567 = vadd.f32 %v169, %v566
    %568 = vdwg.mxu0
    %569 = vmatpush.bf16.msra.mxu0 %v442
    %570 = vmatpush.bf16.msra.mxu0 %v441
    %571 = vmatpush.bf16.msra.mxu0 %v440
    %572 = vmatpush.bf16.msra.mxu0 %v439
    %573 = vmatpush.bf16.msra.mxu0 %v438
    %574 = vmatpush.bf16.msra.mxu0 %v437
    %575 = vmatpush.bf16.msra.mxu0 %v436
    %576 = vmatpush.bf16.msra.mxu0 %v435
    %577 = vmatmul.bf16.gmra.mxu0 %v32
    %v578 = vpop.f32.mrf.mxu0
    %v579 = vadd.f32 %v565, %v578
    %v580 = vpop.f32.mrf.mxu0
    %v581 = vadd.f32 %v567, %v580
    %582 = vdwg.mxu0
    %583 = vmatpush.bf16.msra.mxu0 %v450
    %584 = vmatpush.bf16.msra.mxu0 %v449
    %585 = vmatpush.bf16.msra.mxu0 %v448
    %586 = vmatpush.bf16.msra.mxu0 %v447
    %587 = vmatpush.bf16.msra.mxu0 %v446
    %588 = vmatpush.bf16.msra.mxu0 %v445
    %589 = vmatpush.bf16.msra.mxu0 %v444
    %590 = vmatpush.bf16.msra.mxu0 %v443
    %591 = vmatmul.bf16.gmra.mxu0 %v33
    %v592 = vpop.f32.mrf.mxu0
    %v593 = vadd.f32 %v579, %v592
    %v594 = vpop.f32.mrf.mxu0
    %v595 = vadd.f32 %v581, %v594
    %596 = vdwg.mxu0
    %597 = vmatpush.bf16.msra.mxu0 %v458
    %598 = vmatpush.bf16.msra.mxu0 %v457
    %599 = vmatpush.bf16.msra.mxu0 %v456
    %600 = vmatpush.bf16.msra.mxu0 %v455
    %601 = vmatpush.bf16.msra.mxu0 %v454
    %602 = vmatpush.bf16.msra.mxu0 %v453
    %603 = vmatpush.bf16.msra.mxu0 %v452
    %604 = vmatpush.bf16.msra.mxu0 %v451
    %605 = vmatmul.bf16.gmra.mxu0 %v34
    %v606 = vpop.f32.mrf.mxu0
    %v607 = vadd.f32 %v593, %v606
    %v608 = vpop.f32.mrf.mxu0
    %v609 = vadd.f32 %v595, %v608
    %610 = vdwg.mxu0
    %611 = vmatpush.bf16.msra.mxu0 %v466
    %612 = vmatpush.bf16.msra.mxu0 %v465
    %613 = vmatpush.bf16.msra.mxu0 %v464
    %614 = vmatpush.bf16.msra.mxu0 %v463
    %615 = vmatpush.bf16.msra.mxu0 %v462
    %616 = vmatpush.bf16.msra.mxu0 %v461
    %617 = vmatpush.bf16.msra.mxu0 %v460
    %618 = vmatpush.bf16.msra.mxu0 %v459
    %619 = vmatmul.bf16.gmra.mxu0 %v35
    %v620 = vpop.f32.mrf.mxu0
    %v621 = vadd.f32 %v607, %v620
    %v622 = vpop.f32.mrf.mxu0
    %v623 = vadd.f32 %v609, %v622
    %624 = vdwg.mxu0
    %625 = vmatpush.bf16.msra.mxu0 %v474
    %626 = vmatpush.bf16.msra.mxu0 %v473
    %627 = vmatpush.bf16.msra.mxu0 %v472
    %628 = vmatpush.bf16.msra.mxu0 %v471
    %629 = vmatpush.bf16.msra.mxu0 %v470
    %630 = vmatpush.bf16.msra.mxu0 %v469
    %631 = vmatpush.bf16.msra.mxu0 %v468
    %632 = vmatpush.bf16.msra.mxu0 %v467
    %633 = vmatmul.bf16.gmra.mxu0 %v36
    %v634 = vpop.f32.mrf.mxu0
    %v635 = vadd.f32 %v621, %v634
    %v636 = vpop.f32.mrf.mxu0
    %v637 = vadd.f32 %v623, %v636
    %638 = vdwg.mxu0
    %639 = vmatpush.bf16.msra.mxu0 %v482
    %640 = vmatpush.bf16.msra.mxu0 %v481
    %641 = vmatpush.bf16.msra.mxu0 %v480
    %642 = vmatpush.bf16.msra.mxu0 %v479
    %643 = vmatpush.bf16.msra.mxu0 %v478
    %644 = vmatpush.bf16.msra.mxu0 %v477
    %645 = vmatpush.bf16.msra.mxu0 %v476
    %646 = vmatpush.bf16.msra.mxu0 %v475
    %647 = vmatmul.bf16.gmra.mxu0 %v37
    %v648 = vpop.f32.mrf.mxu0
    %v649 = vadd.f32 %v635, %v648
    %v650 = vpop.f32.mrf.mxu0
    %v651 = vadd.f32 %v637, %v650
    %652 = vdwg.mxu0
    %653 = vmatpush.bf16.msra.mxu0 %v490
    %654 = vmatpush.bf16.msra.mxu0 %v489
    %655 = vmatpush.bf16.msra.mxu0 %v488
    %656 = vmatpush.bf16.msra.mxu0 %v487
    %657 = vmatpush.bf16.msra.mxu0 %v486
    %658 = vmatpush.bf16.msra.mxu0 %v485
    %659 = vmatpush.bf16.msra.mxu0 %v484
    %660 = vmatpush.bf16.msra.mxu0 %v483
    %661 = vmatmul.bf16.gmra.mxu0 %v38
    %v662 = vpop.f32.mrf.mxu0
    %v663 = vadd.f32 %v649, %v662
    %v664 = vpop.f32.mrf.mxu0
    %v665 = vadd.f32 %v651, %v664
    %666 = vdwg.mxu0
    %v667 = vmax.f32 %v663, 0.0
    %v668 = vmax.f32 %v665, 0.0
    %669 = vst [vmem:[#allocation2] sm:$0xff] %v667
    %670 = vst [vmem:[#allocation2 + $0x8] sm:$0xff] %v668
    // Predicated region
    $region14: #{template_forward.1} parent=1 // pred_check
      _
    $region15: #{template_forward.1} parent=1 // pred_check_branch
      %672 = sbr.rel (0) target = $region17
    $region16: #{template_forward.1} parent=1 // pred_region
      %674 = vsyncadd [#allocation3], 0
      %s675 = sshll.u32 [#allocation2], 4
      %s676 = int_to_ptr.vmem [resolvable:$true] %s675
      %s677 = sshll.u32 %s3, 4
      %s678 = int_to_ptr.hbm [resolvable:$true] %s677
      %683 = dma.vmem_to_hbm [thread:$0]  %s676, 256, %s678, [#allocation3], 128, 128, 8
    $region17: #{template_forward.1} parent=1 // pred_fallthru
      _
    // Predicated region
    $region18: #{template_forward.1} parent=1 // pred_check
      _
    $region19: #{template_forward.1} parent=1 // pred_check_branch
      %685 = sbr.rel (0) target = $region21
    $region20: #{template_forward.1} parent=1 // pred_region
      %687 = dma.done [#allocation3], 256
    $region21: #{template_forward.1} parent=1 // pred_fallthru
      _
    %688 = vsyncpa [#allocation3], 1

</llo_original>
